<compile_context>
chip_gen: v7x
topology: tpu7x:2x2x1
jax: 0.10.0
libtpu: 0.0.40
codegen_flags: <defaults>
</compile_context>

<pallas_src>
import functools

import jax
import jax.numpy as jnp
from jax.experimental import pallas as pl
from jax.experimental.pallas import tpu as pltpu

BN_EPS = 1e-5
LANE = 128  # lane-dense feature / node padding


def _round_up(n, m):
    return (n + m - 1) // m * m


# ----------------------------------------------------------------------------
# Fused Pallas kernel: all layers of GCNConv + folded-BN [+ ReLU], unrolled.
# ----------------------------------------------------------------------------
def _fused_gnn_kernel(adj_ref, x_ref, w_ref, b_ref, out_ref, *, num_layers):
    adj = adj_ref[...]          # [Np, Np] f32, resident in VMEM for all layers
    h = x_ref[...]              # [Np, D]  f32 running activation (a traced value)
    for layer in range(num_layers):           # static unroll -> one kernel invocation
        # Aggregate: A_hat @ H           [Np,Np] @ [Np,D] -> [Np,D]   (MXU, f32)
        ah = jnp.dot(adj, h, preferred_element_type=jnp.float32)
        # Transform: (A_hat @ H) @ W'    [Np,D] @ [D,D] -> [Np,D]     (bf16 ops, f32 acc)
        h = jnp.dot(ah.astype(jnp.bfloat16), w_ref[layer],
                    preferred_element_type=jnp.float32)
        # + folded BN bias (BN already folded into W'/b' in the wrapper)
        h = h + b_ref[layer]
        if layer < num_layers - 1:
            # ReLU on every layer except the last (eval-mode dropout is identity)
            h = jnp.maximum(h, 0.0)
    out_ref[...] = h


# ----------------------------------------------------------------------------
# Glue: adjacency normalization, BN folding + padding, forward wrapper
# ----------------------------------------------------------------------------
def normalized_adjacency(edge_index, num_nodes):
    """A_hat = D^-1/2 (A + I) D^-1/2 from a [2, E] edge_index (dense, small graphs)."""
    src, dst = edge_index
    adj = jnp.zeros((num_nodes, num_nodes), jnp.float32)
    adj = adj.at[src, dst].set(1.0)
    diag = jnp.arange(num_nodes)
    # SET (not add) the diagonal -> PyG add_remaining_self_loops with fill=1.0
    # (GCNConv default improved=False); no doubling if edges already contain loops.
    adj = adj.at[diag, diag].set(1.0)
    deg = adj.sum(axis=1)
    d_inv_sqrt = jnp.where(deg > 0, jax.lax.rsqrt(deg), 0.0)
    return d_inv_sqrt[:, None] * adj * d_inv_sqrt[None, :]


def init_params(key, num_features, hidden_dim, num_layers):
    """Deterministic parameter init matching ImprovedGNN.__init__ shapes."""
    params = []
    in_dim = num_features
    for _ in range(num_layers):
        key, kw, km, kv = jax.random.split(key, 4)
        w = jax.random.normal(kw, (in_dim, hidden_dim), jnp.float32) * 0.1
        b = jnp.zeros((hidden_dim,), jnp.float32)
        gamma = jnp.ones((hidden_dim,), jnp.float32)
        beta = jnp.zeros((hidden_dim,), jnp.float32)
        # non-trivial (but deterministic) running stats so BN folding actually does work
        running_mean = jax.random.normal(km, (hidden_dim,), jnp.float32) * 0.05
        running_var = 1.0 + 0.1 * jax.random.uniform(kv, (hidden_dim,), jnp.float32)
        params.append(dict(w=w, b=b, gamma=gamma, beta=beta,
                           running_mean=running_mean, running_var=running_var))
        in_dim = hidden_dim
    return params


def fold_and_pad_params(params, pad_dim=LANE):
    """Fold eval-mode BN into W/b and zero-pad to [pad_dim, pad_dim] / [pad_dim]."""
    w_list, b_list = [], []
    for p in params:
        s = p["gamma"] * jax.lax.rsqrt(p["running_var"] + BN_EPS)      # [H]
        w_f = p["w"] * s[None, :]                                      # [in, H]
        b_f = (p["b"] - p["running_mean"]) * s + p["beta"]             # [H]
        in_dim, h_dim = w_f.shape
        assert in_dim <= pad_dim and h_dim <= pad_dim
        w_pad = jnp.zeros((pad_dim, pad_dim), jnp.float32).at[:in_dim, :h_dim].set(w_f)
        b_pad = jnp.zeros((pad_dim,), jnp.float32).at[:h_dim].set(b_f)
        w_list.append(w_pad)
        b_list.append(b_pad)
    w_all = jnp.stack(w_list).astype(jnp.bfloat16)                     # [L, D, D] bf16
    b_all = jnp.stack(b_list).reshape(len(params), 1, pad_dim)         # [L, 1, D] f32
    return w_all, b_all


def improved_gnn_forward(x, edge_index, params):
    n, f = x.shape
    hidden_dim = params[-1]["w"].shape[1]
    num_layers = len(params)
    d = LANE
    n_pad = _round_up(n, LANE)          # lane-dense adjacency / activation blocks
    assert f <= d and hidden_dim <= d

    # Adjacency stays f32 (resident in VMEM, precision at zero cost at these sizes).
    adj = normalized_adjacency(edge_index, n)                               # [N, N]
    adj_pad = jnp.zeros((n_pad, n_pad), jnp.float32).at[:n, :n].set(adj)
    x_pad = jnp.zeros((n_pad, d), jnp.float32).at[:n, :f].set(x)
    w_all, b_all = fold_and_pad_params(params, d)                           # [L,D,D], [L,1,D]

    flops = num_layers * (2 * n_pad * n_pad * d + 2 * n_pad * d * d)
    bytes_accessed = (adj_pad.size * 4 + x_pad.size * 4 + w_all.size * 2
                      + b_all.size * 4 + n_pad * d * 4)

    out_pad = pl.pallas_call(
        functools.partial(_fused_gnn_kernel, num_layers=num_layers),
        out_shape=jax.ShapeDtypeStruct((n_pad, d), jnp.float32),
        # No grid: every operand is a single whole block, resident in VMEM, loaded
        # exactly once -> no pipelining / double-buffering machinery needed.
        in_specs=[
            pl.BlockSpec(memory_space=pltpu.MemorySpace.VMEM),   # adj   [Np, Np] f32
            pl.BlockSpec(memory_space=pltpu.MemorySpace.VMEM),   # x     [Np, D]  f32
            pl.BlockSpec(memory_space=pltpu.MemorySpace.VMEM),   # W'    [L, D, D] bf16
            pl.BlockSpec(memory_space=pltpu.MemorySpace.VMEM),   # b'    [L, 1, D] f32
        ],
        out_specs=pl.BlockSpec(memory_space=pltpu.MemorySpace.VMEM),
        compiler_params=pltpu.CompilerParams(
            vmem_limit_bytes=32 * 1024 * 1024,  # explicit; safe on v5e/v6e/v7x
        ),
        cost_estimate=pl.CostEstimate(
            flops=flops, transcendentals=0, bytes_accessed=bytes_accessed),
    )(adj_pad, x_pad, w_all, b_all)

    return out_pad[:n, :hidden_dim]


# ----------------------------------------------------------------------------
# Pure-JAX f32 reference (unfolded BN) for validation
# ----------------------------------------------------------------------------
def reference_forward(x, edge_index, params):
    adj = normalized_adjacency(edge_index, x.shape[0])
    num_layers = len(params)
    h = x
    for i, p in enumerate(params):
        h = adj @ (h @ p["w"]) + p["b"]
        h = (p["gamma"] * (h - p["running_mean"])
             * jax.lax.rsqrt(p["running_var"] + BN_EPS) + p["beta"])
        if i < num_layers - 1:
            h = jnp.maximum(h, 0.0)
    return h


# ----------------------------------------------------------------------------
if __name__ == "__main__":
    NUM_NODES = 32        # e.g. 16 "user" nodes + 16 "item" nodes
    NUM_FEATURES = 25     # 6 stat features + 19 genre features (see create_node_features)
    HIDDEN_DIM = 32
    NUM_LAYERS = 3

    key = jax.random.PRNGKey(0)
    key, kx = jax.random.split(key)

    # deterministic node features (stand-in for the StandardScaler'd feature matrix)
    x = jax.random.normal(kx, (NUM_NODES, NUM_FEATURES), jnp.float32)

    # deterministic bipartite user->item edges, stored in both directions
    users = jnp.arange(16, dtype=jnp.int32)
    items = 16 + (users * 3) % 16
    src = jnp.concatenate([users, items])
    dst = jnp.concatenate([items, users])
    edge_index = jnp.stack([src, dst], axis=0)  # [2, E]

    params = init_params(key, NUM_FEATURES, HIDDEN_DIM, NUM_LAYERS)

    out = improved_gnn_forward(x, edge_index, params)
    out = jax.block_until_ready(out)
    assert out.shape == (NUM_NODES, HIDDEN_DIM)
    assert bool(jnp.all(jnp.isfinite(out)))

    # validate fused kernel against f32 reference (bf16 transform matmuls -> loose tol)
    ref = reference_forward(x, edge_index, params)
    assert bool(jnp.allclose(out, ref, rtol=5e-2, atol=5e-2)), float(
        jnp.max(jnp.abs(out - ref)))

    print("KERNEL_OK")
</pallas_src>

<mosaic_0001>
module attributes {stable_mosaic.version = 11 : i64} {
  func.func @_fused_gnn_kernel(%arg0: memref<128x128xf32, #tpu.memory_space<vmem>>, %arg1: memref<128x128xf32, #tpu.memory_space<vmem>>, %arg2: memref<3x128x128xbf16, #tpu.memory_space<vmem>>, %arg3: memref<3x1x128xf32, #tpu.memory_space<vmem>>, %arg4: memref<128x128xf32, #tpu.memory_space<vmem>>) attributes {dimension_semantics = [], scalar_prefetch = 0 : i64, scratch_operands = 0 : i64, tpu.core_type = #tpu.core_type<tc>} {
    %c0 = arith.constant 0 : index
    %c0_0 = arith.constant 0 : index
    %0 = vector.load %arg0[%c0, %c0_0] : memref<128x128xf32, #tpu.memory_space<vmem>>, vector<128x128xf32>
    %c0_1 = arith.constant 0 : index
    %c0_2 = arith.constant 0 : index
    %1 = vector.load %arg1[%c0_1, %c0_2] : memref<128x128xf32, #tpu.memory_space<vmem>>, vector<128x128xf32>
    %cst = arith.constant dense<0.000000e+00> : vector<128x128xf32>
    %2 = tpu.matmul %0, %1, %cst {dimension_numbers = #tpu.dot_dimension_numbers<[1], [0], [0], [1], [0, 0, 1, 1], [], []>} : vector<128x128xf32>, vector<128x128xf32>, vector<128x128xf32> -> vector<128x128xf32>
    %3 = arith.truncf %2 : vector<128x128xf32> to vector<128x128xbf16>
    %c0_3 = arith.constant 0 : index
    %c0_4 = arith.constant 0 : index
    %c0_5 = arith.constant 0 : index
    %4 = vector.load %arg2[%c0_3, %c0_4, %c0_5] : memref<3x128x128xbf16, #tpu.memory_space<vmem>>, vector<1x128x128xbf16>
    %5 = vector.shape_cast %4 : vector<1x128x128xbf16> to vector<128x128xbf16>
    %cst_6 = arith.constant dense<0.000000e+00> : vector<128x128xf32>
    %6 = tpu.matmul %3, %5, %cst_6 {dimension_numbers = #tpu.dot_dimension_numbers<[1], [0], [0], [1], [0, 0, 1, 1], [], []>} : vector<128x128xbf16>, vector<128x128xbf16>, vector<128x128xf32> -> vector<128x128xf32>
    %c0_7 = arith.constant 0 : index
    %c0_8 = arith.constant 0 : index
    %c0_9 = arith.constant 0 : index
    %7 = vector.load %arg3[%c0_7, %c0_8, %c0_9] : memref<3x1x128xf32, #tpu.memory_space<vmem>>, vector<1x1x128xf32>
    %8 = vector.shape_cast %7 : vector<1x1x128xf32> to vector<1x128xf32>
    %9 = vector.broadcast %8 : vector<1x128xf32> to vector<128x128xf32>
    %10 = arith.addf %6, %9 : vector<128x128xf32>
    %cst_10 = arith.constant 0.000000e+00 : f32
    %11 = vector.broadcast %cst_10 : f32 to vector<128x128xf32>
    %12 = arith.maximumf %10, %11 : vector<128x128xf32>
    %cst_11 = arith.constant dense<0.000000e+00> : vector<128x128xf32>
    %13 = tpu.matmul %0, %12, %cst_11 {dimension_numbers = #tpu.dot_dimension_numbers<[1], [0], [0], [1], [0, 0, 1, 1], [], []>} : vector<128x128xf32>, vector<128x128xf32>, vector<128x128xf32> -> vector<128x128xf32>
    %14 = arith.truncf %13 : vector<128x128xf32> to vector<128x128xbf16>
    %c1 = arith.constant 1 : index
    %c0_12 = arith.constant 0 : index
    %c0_13 = arith.constant 0 : index
    %15 = vector.load %arg2[%c1, %c0_12, %c0_13] : memref<3x128x128xbf16, #tpu.memory_space<vmem>>, vector<1x128x128xbf16>
    %16 = vector.shape_cast %15 : vector<1x128x128xbf16> to vector<128x128xbf16>
    %cst_14 = arith.constant dense<0.000000e+00> : vector<128x128xf32>
    %17 = tpu.matmul %14, %16, %cst_14 {dimension_numbers = #tpu.dot_dimension_numbers<[1], [0], [0], [1], [0, 0, 1, 1], [], []>} : vector<128x128xbf16>, vector<128x128xbf16>, vector<128x128xf32> -> vector<128x128xf32>
    %c1_15 = arith.constant 1 : index
    %c0_16 = arith.constant 0 : index
    %c0_17 = arith.constant 0 : index
    %18 = vector.load %arg3[%c1_15, %c0_16, %c0_17] : memref<3x1x128xf32, #tpu.memory_space<vmem>>, vector<1x1x128xf32>
    %19 = vector.shape_cast %18 : vector<1x1x128xf32> to vector<1x128xf32>
    %20 = vector.broadcast %19 : vector<1x128xf32> to vector<128x128xf32>
    %21 = arith.addf %17, %20 : vector<128x128xf32>
    %cst_18 = arith.constant 0.000000e+00 : f32
    %22 = vector.broadcast %cst_18 : f32 to vector<128x128xf32>
    %23 = arith.maximumf %21, %22 : vector<128x128xf32>
    %cst_19 = arith.constant dense<0.000000e+00> : vector<128x128xf32>
    %24 = tpu.matmul %0, %23, %cst_19 {dimension_numbers = #tpu.dot_dimension_numbers<[1], [0], [0], [1], [0, 0, 1, 1], [], []>} : vector<128x128xf32>, vector<128x128xf32>, vector<128x128xf32> -> vector<128x128xf32>
    %25 = arith.truncf %24 : vector<128x128xf32> to vector<128x128xbf16>
    %c2 = arith.constant 2 : index
    %c0_20 = arith.constant 0 : index
    %c0_21 = arith.constant 0 : index
    %26 = vector.load %arg2[%c2, %c0_20, %c0_21] : memref<3x128x128xbf16, #tpu.memory_space<vmem>>, vector<1x128x128xbf16>
    %27 = vector.shape_cast %26 : vector<1x128x128xbf16> to vector<128x128xbf16>
    %cst_22 = arith.constant dense<0.000000e+00> : vector<128x128xf32>
    %28 = tpu.matmul %25, %27, %cst_22 {dimension_numbers = #tpu.dot_dimension_numbers<[1], [0], [0], [1], [0, 0, 1, 1], [], []>} : vector<128x128xbf16>, vector<128x128xbf16>, vector<128x128xf32> -> vector<128x128xf32>
    %c2_23 = arith.constant 2 : index
    %c0_24 = arith.constant 0 : index
    %c0_25 = arith.constant 0 : index
    %29 = vector.load %arg3[%c2_23, %c0_24, %c0_25] : memref<3x1x128xf32, #tpu.memory_space<vmem>>, vector<1x1x128xf32>
    %30 = vector.shape_cast %29 : vector<1x1x128xf32> to vector<1x128xf32>
    %31 = vector.broadcast %30 : vector<1x128xf32> to vector<128x128xf32>
    %32 = arith.addf %28, %31 : vector<128x128xf32>
    %c0_26 = arith.constant 0 : index
    %c0_27 = arith.constant 0 : index
    %33 = vector.load %arg4[%c0_26, %c0_27] : memref<128x128xf32, #tpu.memory_space<vmem>>, vector<128x128xf32>
    tpu.vector_store %arg4[%c0_26, %c0_27], %32 {strides = array<i32>} : memref<128x128xf32, #tpu.memory_space<vmem>>, vector<128x128xf32>,
    return
  }
}

</mosaic_0001>

<llo_original>
// kernel: tpu_custom_call.1
$region0: #{tpu_custom_call.1}
  #allocation0 [shape = 'u32[]', space=smem, size = 0x4, offset = 0x4, fixed_abs, tag = 'smem constant byte address 0x4 - core index']
  #allocation1 [shape = 'u32[144,128]{1,0:T(1,128)}', space=vmem, size = 0x12000, scoped, tag = 'internal scratch']
  %s0 = inlined_call_operand.hbm [shape: f32[128,128], index: 0, kind: input, shape index: {}]
  %s1 = inlined_call_operand.hbm [shape: f32[128,128], index: 1, kind: input, shape index: {}]
  %s2 = inlined_call_operand.hbm [shape: bf16[3,128,128], index: 2, kind: input, shape index: {}]
  %s3 = inlined_call_operand.vmem [shape: f32[3,1,128], index: 3, kind: input, shape index: {}]
  %s4 = inlined_call_operand.hbm [shape: f32[128,128], index: 4, kind: output, shape index: {}]
  %s5 = sld [smem:[#allocation0]]
  $region38: #{tpu_custom_call.1} parent=0
    _
  %s7 = ssub.s32 1, %s5
  %s8 = scalar_select 0, %s7, %s5
  $region1: #{tpu_custom_call.1} parent=0
    #allocation2 [shape = 'u8[65536]{0}', space=vmem, size = 0x10000, scoped, tag = 'input window, operand 0, single buffered']
    #allocation3 [shape = 's32[1]{0}', space=sflag, size = 0x4, scoped, tag = 'scoped memory for tpu_custom_call.1']
    #allocation4 [shape = 's32[1]{0}', space=sflag, size = 0x4, scoped, tag = 'scoped memory for tpu_custom_call.1']
    #allocation5 [shape = 'u8[65536]{0}', space=vmem, size = 0x10000, scoped, tag = 'input window, operand 1, single buffered']
    #allocation6 [shape = 's32[1]{0}', space=sflag, size = 0x4, scoped, tag = 'scoped memory for tpu_custom_call.1']
    #allocation7 [shape = 'u8[98304]{0}', space=vmem, size = 0x18000, scoped, tag = 'input window, operand 2, single buffered']
    #allocation8 [shape = 'u8[65536]{0}', space=vmem, size = 0x10000, scoped, tag = 'output window, operand 0, single buffered']
    %9 = vsyncpa [#allocation3], 0
    %10 = vsyncpa [#allocation6], 0
    %11 = vsyncpa [#allocation4], 0
    // Predicated region
    $region2: #{tpu_custom_call.1} parent=1 // pred_check
      _
    $region3: #{tpu_custom_call.1} parent=1 // pred_check_branch
      %13 = sbr.rel (0) target = $region5
    $region4: #{tpu_custom_call.1} parent=1 // pred_region
      %s15 = ssub.s32 2048, 2048
      %16 = vsyncadd [#allocation3], %s15
      %s17 = sshll.u32 [#allocation2], 4
      %s18 = int_to_ptr.vmem [resolvable:$true] %s17
      %23 = dma.hbm_to_vmem [thread:$0]  %s0, 2048, %s18, [#allocation3], 128, 128, 8
    $region5: #{tpu_custom_call.1} parent=1 // pred_fallthru
      _
    // Predicated region
    $region6: #{tpu_custom_call.1} parent=1 // pred_check
      _
    $region7: #{tpu_custom_call.1} parent=1 // pred_check_branch
      %25 = sbr.rel (0) target = $region9
    $region8: #{tpu_custom_call.1} parent=1 // pred_region
      %s27 = ssub.s32 2048, 2048
      %28 = vsyncadd [#allocation6], %s27
      %s29 = sshll.u32 [#allocation5], 4
      %s30 = int_to_ptr.vmem [resolvable:$true] %s29
      %35 = dma.hbm_to_vmem [thread:$0]  %s1, 2048, %s30, [#allocation6], 128, 128, 8
    $region9: #{tpu_custom_call.1} parent=1 // pred_fallthru
      _
    // Predicated region
    $region10: #{tpu_custom_call.1} parent=1 // pred_check
      _
    $region11: #{tpu_custom_call.1} parent=1 // pred_check_branch
      %37 = sbr.rel (0) target = $region13
    $region12: #{tpu_custom_call.1} parent=1 // pred_region
      %s39 = ssub.s32 3072, 3072
      %40 = vsyncadd [#allocation6], %s39
      %s41 = sshll.u32 [#allocation7], 4
      %s42 = int_to_ptr.vmem [resolvable:$true] %s41
      %47 = dma.hbm_to_vmem [thread:$0]  %s2, 3072, %s42, [#allocation6], 64, 64, 4
    $region13: #{tpu_custom_call.1} parent=1 // pred_fallthru
      _
    // Predicated region
    $region14: #{tpu_custom_call.1} parent=1 // pred_check
      _
    $region15: #{tpu_custom_call.1} parent=1 // pred_check_branch
      %49 = sbr.rel (0) target = $region17
    $region16: #{tpu_custom_call.1} parent=1 // pred_region
      _
    $region17: #{tpu_custom_call.1} parent=1 // pred_fallthru
      _
    // Predicated region
    $region18: #{tpu_custom_call.1} parent=1 // pred_check
      _
    $region19: #{tpu_custom_call.1} parent=1 // pred_check_branch
      %51 = sbr.rel (0) target = $region21
    $region20: #{tpu_custom_call.1} parent=1 // pred_region
      %52 = dma.done [#allocation3], 2048
    $region21: #{tpu_custom_call.1} parent=1 // pred_fallthru
      _
    // Predicated region
    $region22: #{tpu_custom_call.1} parent=1 // pred_check
      _
    $region23: #{tpu_custom_call.1} parent=1 // pred_check_branch
      %54 = sbr.rel (0) target = $region25
    $region24: #{tpu_custom_call.1} parent=1 // pred_region
      %55 = dma.done [#allocation6], 2048
    $region25: #{tpu_custom_call.1} parent=1 // pred_fallthru
      _
    // Predicated region
    $region26: #{tpu_custom_call.1} parent=1 // pred_check
      _
    $region27: #{tpu_custom_call.1} parent=1 // pred_check_branch
      %57 = sbr.rel (0) target = $region29
    $region28: #{tpu_custom_call.1} parent=1 // pred_region
      %58 = dma.done [#allocation6], 3072
    $region29: #{tpu_custom_call.1} parent=1 // pred_fallthru
      _
    %v60 = vld [vmem:[#allocation2] sm:$0xff]
    %v61 = vld [vmem:[#allocation2 + $0x8] sm:$0xff]
    %v62 = vld [vmem:[#allocation2 + $0x10] sm:$0xff]
    %v63 = vld [vmem:[#allocation2 + $0x18] sm:$0xff]
    %v64 = vld [vmem:[#allocation2 + $0x20] sm:$0xff]
    %v65 = vld [vmem:[#allocation2 + $0x28] sm:$0xff]
    %v66 = vld [vmem:[#allocation2 + $0x30] sm:$0xff]
    %v67 = vld [vmem:[#allocation2 + $0x38] sm:$0xff]
    %v68 = vld [vmem:[#allocation2 + $0x40] sm:$0xff]
    %v69 = vld [vmem:[#allocation2 + $0x48] sm:$0xff]
    %v70 = vld [vmem:[#allocation2 + $0x50] sm:$0xff]
    %v71 = vld [vmem:[#allocation2 + $0x58] sm:$0xff]
    %v72 = vld [vmem:[#allocation2 + $0x60] sm:$0xff]
    %v73 = vld [vmem:[#allocation2 + $0x68] sm:$0xff]
    %v74 = vld [vmem:[#allocation2 + $0x70] sm:$0xff]
    %v75 = vld [vmem:[#allocation2 + $0x78] sm:$0xff]
    %v76 = vld [vmem:[#allocation5] sm:$0xff]
    %v77 = vld [vmem:[#allocation5 + $0x8] sm:$0xff]
    %v78 = vld [vmem:[#allocation5 + $0x10] sm:$0xff]
    %v79 = vld [vmem:[#allocation5 + $0x18] sm:$0xff]
    %v80 = vld [vmem:[#allocation5 + $0x20] sm:$0xff]
    %v81 = vld [vmem:[#allocation5 + $0x28] sm:$0xff]
    %v82 = vld [vmem:[#allocation5 + $0x30] sm:$0xff]
    %v83 = vld [vmem:[#allocation5 + $0x38] sm:$0xff]
    %v84 = vld [vmem:[#allocation5 + $0x40] sm:$0xff]
    %v85 = vld [vmem:[#allocation5 + $0x48] sm:$0xff]
    %v86 = vld [vmem:[#allocation5 + $0x50] sm:$0xff]
    %v87 = vld [vmem:[#allocation5 + $0x58] sm:$0xff]
    %v88 = vld [vmem:[#allocation5 + $0x60] sm:$0xff]
    %v89 = vld [vmem:[#allocation5 + $0x68] sm:$0xff]
    %v90 = vld [vmem:[#allocation5 + $0x70] sm:$0xff]
    %v91 = vld [vmem:[#allocation5 + $0x78] sm:$0xff]
    %92 = vmatprep.subr.mxu0 0.0
    %93 = vmatpush1.msra.mxu0 %v76
    %94 = vmatprep.subr.mxu0 0.0
    %95 = vmatpush1.msra.mxu0 %v77
    %96 = vmatprep.subr.mxu0 0.0
    %97 = vmatpush1.msra.mxu0 %v78
    %98 = vmatprep.subr.mxu0 0.0
    %99 = vmatpush1.msra.mxu0 %v79
    %100 = vmatprep.subr.mxu0 0.0
    %101 = vmatpush1.msra.mxu0 %v80
    %102 = vmatprep.subr.mxu0 0.0
    %103 = vmatpush1.msra.mxu0 %v81
    %104 = vmatprep.subr.mxu0 0.0
    %105 = vmatpush1.msra.mxu0 %v82
    %106 = vmatprep.subr.mxu0 0.0
    %107 = vmatpush1.msra.mxu0 %v83
    %108 = vmatprep.subr.mxu0 0.0
    %109 = vmatpush1.msra.mxu0 %v84
    %110 = vmatprep.subr.mxu0 0.0
    %111 = vmatpush1.msra.mxu0 %v85
    %112 = vmatprep.subr.mxu0 0.0
    %113 = vmatpush1.msra.mxu0 %v86
    %114 = vmatprep.subr.mxu0 0.0
    %115 = vmatpush1.msra.mxu0 %v87
    %116 = vmatprep.subr.mxu0 0.0
    %117 = vmatpush1.msra.mxu0 %v88
    %118 = vmatprep.subr.mxu0 0.0
    %119 = vmatpush1.msra.mxu0 %v89
    %120 = vmatprep.subr.mxu0 0.0
    %121 = vmatpush1.msra.mxu0 %v90
    %122 = vmatprep.subr.mxu0 0.0
    %123 = vmatpush1.msra.mxu0 %v91
    %124 = vmatprep.subr.mxu0 0.0
    %125 = vmatpush1.msra.mxu0 0.0
    %126 = vmatprep.subr.mxu0 0.0
    %127 = vmatpush1.msra.mxu0 0.0
    %128 = vmatprep.subr.mxu0 0.0
    %129 = vmatpush1.msra.mxu0 0.0
    %130 = vmatprep.subr.mxu0 0.0
    %131 = vmatpush1.msra.mxu0 0.0
    %132 = vmatprep.subr.mxu0 0.0
    %133 = vmatpush1.msra.mxu0 0.0
    %134 = vmatprep.subr.mxu0 0.0
    %135 = vmatpush1.msra.mxu0 0.0
    %136 = vmatprep.subr.mxu0 0.0
    %137 = vmatpush1.msra.mxu0 0.0
    %138 = vmatprep.subr.mxu0 0.0
    %139 = vmatpush1.msra.mxu0 0.0
    %140 = vmatprep.subr.mxu0 0.0
    %141 = vmatpush1.msra.mxu0 0.0
    %142 = vmatprep.subr.mxu0 0.0
    %143 = vmatpush1.msra.mxu0 0.0
    %144 = vmatprep.subr.mxu0 0.0
    %145 = vmatpush1.msra.mxu0 0.0
    %146 = vmatprep.subr.mxu0 0.0
    %147 = vmatpush1.msra.mxu0 0.0
    %148 = vmatprep.subr.mxu0 0.0
    %149 = vmatpush1.msra.mxu0 0.0
    %150 = vmatprep.subr.mxu0 0.0
    %151 = vmatpush1.msra.mxu0 0.0
    %152 = vmatprep.subr.mxu0 0.0
    %153 = vmatpush1.msra.mxu0 0.0
    %154 = vmatprep.subr.mxu0 0.0
    %155 = vmatpush1.msra.mxu0 0.0
    %156 = vmatprep.mubr.f32.mxu0 0.0
    %157 = vmatmul.mubr.f32.gmra.mrb[0].mxu0 %v60
    %v158 = vpop.f32.mrb[0].mxu0
    %v159 = vadd.f32 0.0, %v158
    %v160 = vpop.f32.mrb[0].mxu0
    %161 = vmatprep.mubr.f32.mxu0 0.0
    %162 = vmatmul.mubr.f32.gmra.mrb[0].mxu0 %v61
    %v163 = vpop.f32.mrb[0].mxu0
    %v164 = vadd.f32 0.0, %v163
    %v165 = vpop.f32.mrb[0].mxu0
    %166 = vmatprep.mubr.f32.mxu0 0.0
    %167 = vmatmul.mubr.f32.gmra.mrb[0].mxu0 %v62
    %v168 = vpop.f32.mrb[0].mxu0
    %v169 = vadd.f32 0.0, %v168
    %v170 = vpop.f32.mrb[0].mxu0
    %171 = vmatprep.mubr.f32.mxu0 0.0
    %172 = vmatmul.mubr.f32.gmra.mrb[0].mxu0 %v63
    %v173 = vpop.f32.mrb[0].mxu0
    %v174 = vadd.f32 0.0, %v173
    %v175 = vpop.f32.mrb[0].mxu0
    %176 = vmatprep.mubr.f32.mxu0 0.0
    %177 = vmatmul.mubr.f32.gmra.mrb[0].mxu0 %v64
    %v178 = vpop.f32.mrb[0].mxu0
    %v179 = vadd.f32 0.0, %v178
    %v180 = vpop.f32.mrb[0].mxu0
    %181 = vmatprep.mubr.f32.mxu0 0.0
    %182 = vmatmul.mubr.f32.gmra.mrb[0].mxu0 %v65
    %v183 = vpop.f32.mrb[0].mxu0
    %v184 = vadd.f32 0.0, %v183
    %v185 = vpop.f32.mrb[0].mxu0
    %186 = vmatprep.mubr.f32.mxu0 0.0
    %187 = vmatmul.mubr.f32.gmra.mrb[0].mxu0 %v66
    %v188 = vpop.f32.mrb[0].mxu0
    %v189 = vadd.f32 0.0, %v188
    %v190 = vpop.f32.mrb[0].mxu0
    %191 = vmatprep.mubr.f32.mxu0 0.0
    %192 = vmatmul.mubr.f32.gmra.mrb[0].mxu0 %v67
    %v193 = vpop.f32.mrb[0].mxu0
    %v194 = vadd.f32 0.0, %v193
    %v195 = vpop.f32.mrb[0].mxu0
    %196 = vmatprep.mubr.f32.mxu0 0.0
    %197 = vmatmul.mubr.f32.gmra.mrb[0].mxu0 %v68
    %v198 = vpop.f32.mrb[0].mxu0
    %v199 = vadd.f32 0.0, %v198
    %v200 = vpop.f32.mrb[0].mxu0
    %201 = vmatprep.mubr.f32.mxu0 0.0
    %202 = vmatmul.mubr.f32.gmra.mrb[0].mxu0 %v69
    %v203 = vpop.f32.mrb[0].mxu0
    %v204 = vadd.f32 0.0, %v203
    %v205 = vpop.f32.mrb[0].mxu0
    %206 = vmatprep.mubr.f32.mxu0 0.0
    %207 = vmatmul.mubr.f32.gmra.mrb[0].mxu0 %v70
    %v208 = vpop.f32.mrb[0].mxu0
    %v209 = vadd.f32 0.0, %v208
    %v210 = vpop.f32.mrb[0].mxu0
    %211 = vmatprep.mubr.f32.mxu0 0.0
    %212 = vmatmul.mubr.f32.gmra.mrb[0].mxu0 %v71
    %v213 = vpop.f32.mrb[0].mxu0
    %v214 = vadd.f32 0.0, %v213
    %v215 = vpop.f32.mrb[0].mxu0
    %216 = vmatprep.mubr.f32.mxu0 0.0
    %217 = vmatmul.mubr.f32.gmra.mrb[0].mxu0 %v72
    %v218 = vpop.f32.mrb[0].mxu0
    %v219 = vadd.f32 0.0, %v218
    %v220 = vpop.f32.mrb[0].mxu0
    %221 = vmatprep.mubr.f32.mxu0 0.0
    %222 = vmatmul.mubr.f32.gmra.mrb[0].mxu0 %v73
    %v223 = vpop.f32.mrb[0].mxu0
    %v224 = vadd.f32 0.0, %v223
    %v225 = vpop.f32.mrb[0].mxu0
    %226 = vmatprep.mubr.f32.mxu0 0.0
    %227 = vmatmul.mubr.f32.gmra.mrb[0].mxu0 %v74
    %v228 = vpop.f32.mrb[0].mxu0
    %v229 = vadd.f32 0.0, %v228
    %v230 = vpop.f32.mrb[0].mxu0
    %231 = vmatprep.mubr.f32.mxu0 0.0
    %232 = vmatmul.mubr.f32.gmra.mrb[0].mxu0 %v75
    %v233 = vpop.f32.mrb[0].mxu0
    %v234 = vadd.f32 0.0, %v233
    %v235 = vpop.f32.mrb[0].mxu0
    %236 = vdwg.mxu0
    %v237 = vpack.c.bf16 %v164, %v159
    %v238 = vpack.c.bf16 %v174, %v169
    %v239 = vpack.c.bf16 %v184, %v179
    %v240 = vpack.c.bf16 %v194, %v189
    %v241 = vpack.c.bf16 %v204, %v199
    %v242 = vpack.c.bf16 %v214, %v209
    %v243 = vpack.c.bf16 %v224, %v219
    %v244 = vpack.c.bf16 %v234, %v229
    %v245 = vld [vmem:[#allocation7] sm:$0xf]
    %v246 = vld [vmem:[#allocation7 + $0x4] sm:$0xf]
    %v247 = vld [vmem:[#allocation7 + $0x8] sm:$0xf]
    %v248 = vld [vmem:[#allocation7 + $0xc] sm:$0xf]
    %v249 = vld [vmem:[#allocation7 + $0x10] sm:$0xf]
    %v250 = vld [vmem:[#allocation7 + $0x14] sm:$0xf]
    %v251 = vld [vmem:[#allocation7 + $0x18] sm:$0xf]
    %v252 = vld [vmem:[#allocation7 + $0x1c] sm:$0xf]
    %v253 = vld [vmem:[#allocation7 + $0x20] sm:$0xf]
    %v254 = vld [vmem:[#allocation7 + $0x24] sm:$0xf]
    %v255 = vld [vmem:[#allocation7 + $0x28] sm:$0xf]
    %v256 = vld [vmem:[#allocation7 + $0x2c] sm:$0xf]
    %v257 = vld [vmem:[#allocation7 + $0x30] sm:$0xf]
    %v258 = vld [vmem:[#allocation7 + $0x34] sm:$0xf]
    %v259 = vld [vmem:[#allocation7 + $0x38] sm:$0xf]
    %v260 = vld [vmem:[#allocation7 + $0x3c] sm:$0xf]
    %v261 = vld [vmem:[%s3] sm:$0x1]
    %v263 = vlaneseq
    %v264 = vshrl.u32 %v263, 7
    %v265 = vsub.s32 0, %v264
    %v266 = vrot.slane %v261, %v265
    %v284 = vunpack.c.l.b16 %v245
    %v285 = vunpack.c.l.b16 %v246
    %v286 = vunpack.c.l.b16 %v247
    %v287 = vunpack.c.l.b16 %v248
    %v288 = vunpack.c.l.b16 %v249
    %v289 = vunpack.c.l.b16 %v250
    %v290 = vunpack.c.l.b16 %v251
    %v291 = vunpack.c.l.b16 %v252
    %v292 = vunpack.c.l.b16 %v253
    %v293 = vunpack.c.l.b16 %v254
    %v294 = vunpack.c.l.b16 %v255
    %v295 = vunpack.c.l.b16 %v256
    %v296 = vunpack.c.l.b16 %v257
    %v297 = vunpack.c.l.b16 %v258
    %v298 = vunpack.c.l.b16 %v259
    %v299 = vunpack.c.l.b16 %v260
    %v300 = vpack.c.b16 %v285, %v284
    %v301 = vpack.c.b16 %v287, %v286
    %v302 = vpack.c.b16 %v289, %v288
    %v303 = vpack.c.b16 %v291, %v290
    %v304 = vpack.c.b16 %v293, %v292
    %v305 = vpack.c.b16 %v295, %v294
    %v306 = vpack.c.b16 %v297, %v296
    %v307 = vpack.c.b16 %v299, %v298
    %316 = vmatprep.subr.bf16.mxu0 0
    %317 = vmatpush1.bf16.msra.mxu0 %v300
    %318 = vmatprep.subr.bf16.mxu0 0
    %319 = vmatpush1.bf16.msra.mxu0 %v301
    %320 = vmatprep.subr.bf16.mxu0 0
    %321 = vmatpush1.bf16.msra.mxu0 %v302
    %322 = vmatprep.subr.bf16.mxu0 0
    %323 = vmatpush1.bf16.msra.mxu0 %v303
    %324 = vmatprep.subr.bf16.mxu0 0
    %325 = vmatpush1.bf16.msra.mxu0 %v304
    %326 = vmatprep.subr.bf16.mxu0 0
    %327 = vmatpush1.bf16.msra.mxu0 %v305
    %328 = vmatprep.subr.bf16.mxu0 0
    %329 = vmatpush1.bf16.msra.mxu0 %v306
    %330 = vmatprep.subr.bf16.mxu0 0
    %331 = vmatpush1.bf16.msra.mxu0 %v307
    %332 = vmatprep.subr.bf16.mxu0 0
    %333 = vmatpush1.bf16.msra.mxu0 0
    %334 = vmatprep.subr.bf16.mxu0 0
    %335 = vmatpush1.bf16.msra.mxu0 0
    %336 = vmatprep.subr.bf16.mxu0 0
    %337 = vmatpush1.bf16.msra.mxu0 0
    %338 = vmatprep.subr.bf16.mxu0 0
    %339 = vmatpush1.bf16.msra.mxu0 0
    %340 = vmatprep.subr.bf16.mxu0 0
    %341 = vmatpush1.bf16.msra.mxu0 0
    %342 = vmatprep.subr.bf16.mxu0 0
    %343 = vmatpush1.bf16.msra.mxu0 0
    %344 = vmatprep.subr.bf16.mxu0 0
    %345 = vmatpush1.bf16.msra.mxu0 0
    %346 = vmatprep.subr.bf16.mxu0 0
    %347 = vmatpush1.bf16.msra.mxu0 0
    %348 = vmatprep.mubr.bf16.mxu0 0
    %349 = vmatmul.mubr.bf16.gmra.mrb[0].mxu0 %v237
    %v350 = vpop.f32.mrb[0].mxu0
    %v351 = vadd.f32 %v266, %v350
    %v352 = vpop.f32.mrb[0].mxu0
    %v353 = vpop.f32.mrb[0].mxu0
    %v354 = vadd.f32 %v266, %v353
    %v355 = vpop.f32.mrb[0].mxu0
    %356 = vmatprep.mubr.bf16.mxu0 0
    %357 = vmatmul.mubr.bf16.gmra.mrb[0].mxu0 %v238
    %v358 = vpop.f32.mrb[0].mxu0
    %v359 = vadd.f32 %v266, %v358
    %v360 = vpop.f32.mrb[0].mxu0
    %v361 = vpop.f32.mrb[0].mxu0
    %v362 = vadd.f32 %v266, %v361
    %v363 = vpop.f32.mrb[0].mxu0
    %364 = vmatprep.mubr.bf16.mxu0 0
    %365 = vmatmul.mubr.bf16.gmra.mrb[0].mxu0 %v239
    %v366 = vpop.f32.mrb[0].mxu0
    %v367 = vadd.f32 %v266, %v366
    %v368 = vpop.f32.mrb[0].mxu0
    %v369 = vpop.f32.mrb[0].mxu0
    %v370 = vadd.f32 %v266, %v369
    %v371 = vpop.f32.mrb[0].mxu0
    %372 = vmatprep.mubr.bf16.mxu0 0
    %373 = vmatmul.mubr.bf16.gmra.mrb[0].mxu0 %v240
    %v374 = vpop.f32.mrb[0].mxu0
    %v375 = vadd.f32 %v266, %v374
    %v376 = vpop.f32.mrb[0].mxu0
    %v377 = vpop.f32.mrb[0].mxu0
    %v378 = vadd.f32 %v266, %v377
    %v379 = vpop.f32.mrb[0].mxu0
    %380 = vmatprep.mubr.bf16.mxu0 0
    %381 = vmatmul.mubr.bf16.gmra.mrb[0].mxu0 %v241
    %v382 = vpop.f32.mrb[0].mxu0
    %v383 = vadd.f32 %v266, %v382
    %v384 = vpop.f32.mrb[0].mxu0
    %v385 = vpop.f32.mrb[0].mxu0
    %v386 = vadd.f32 %v266, %v385
    %v387 = vpop.f32.mrb[0].mxu0
    %388 = vmatprep.mubr.bf16.mxu0 0
    %389 = vmatmul.mubr.bf16.gmra.mrb[0].mxu0 %v242
    %v390 = vpop.f32.mrb[0].mxu0
    %v391 = vadd.f32 %v266, %v390
    %v392 = vpop.f32.mrb[0].mxu0
    %v393 = vpop.f32.mrb[0].mxu0
    %v394 = vadd.f32 %v266, %v393
    %v395 = vpop.f32.mrb[0].mxu0
    %396 = vmatprep.mubr.bf16.mxu0 0
    %397 = vmatmul.mubr.bf16.gmra.mrb[0].mxu0 %v243
    %v398 = vpop.f32.mrb[0].mxu0
    %v399 = vadd.f32 %v266, %v398
    %v400 = vpop.f32.mrb[0].mxu0
    %v401 = vpop.f32.mrb[0].mxu0
    %v402 = vadd.f32 %v266, %v401
    %v403 = vpop.f32.mrb[0].mxu0
    %404 = vmatprep.mubr.bf16.mxu0 0
    %405 = vmatmul.mubr.bf16.gmra.mrb[0].mxu0 %v244
    %v406 = vpop.f32.mrb[0].mxu0
    %v407 = vadd.f32 %v266, %v406
    %v408 = vpop.f32.mrb[0].mxu0
    %v409 = vpop.f32.mrb[0].mxu0
    %v410 = vadd.f32 %v266, %v409
    %v411 = vpop.f32.mrb[0].mxu0
    %412 = vdwg.mxu0
    %v413 = vmax.f32 %v351, 0.0
    %v414 = vmax.f32 %v354, 0.0
    %v415 = vmax.f32 %v359, 0.0
    %v416 = vmax.f32 %v362, 0.0
    %v417 = vmax.f32 %v367, 0.0
    %v418 = vmax.f32 %v370, 0.0
    %v419 = vmax.f32 %v375, 0.0
    %v420 = vmax.f32 %v378, 0.0
    %v421 = vmax.f32 %v383, 0.0
    %v422 = vmax.f32 %v386, 0.0
    %v423 = vmax.f32 %v391, 0.0
    %v424 = vmax.f32 %v394, 0.0
    %v425 = vmax.f32 %v399, 0.0
    %v426 = vmax.f32 %v402, 0.0
    %v427 = vmax.f32 %v407, 0.0
    %v428 = vmax.f32 %v410, 0.0
    %429 = vmatprep.subr.mxu0 0.0
    %430 = vmatpush1.msra.mxu0 %v413
    %431 = vmatprep.subr.mxu0 0.0
    %432 = vmatpush1.msra.mxu0 %v414
    %433 = vmatprep.subr.mxu0 0.0
    %434 = vmatpush1.msra.mxu0 %v415
    %435 = vmatprep.subr.mxu0 0.0
    %436 = vmatpush1.msra.mxu0 %v416
    %437 = vmatprep.subr.mxu0 0.0
    %438 = vmatpush1.msra.mxu0 %v417
    %439 = vmatprep.subr.mxu0 0.0
    %440 = vmatpush1.msra.mxu0 %v418
    %441 = vmatprep.subr.mxu0 0.0
    %442 = vmatpush1.msra.mxu0 %v419
    %443 = vmatprep.subr.mxu0 0.0
    %444 = vmatpush1.msra.mxu0 %v420
    %445 = vmatprep.subr.mxu0 0.0
    %446 = vmatpush1.msra.mxu0 %v421
    %447 = vmatprep.subr.mxu0 0.0
    %448 = vmatpush1.msra.mxu0 %v422
    %449 = vmatprep.subr.mxu0 0.0
    %450 = vmatpush1.msra.mxu0 %v423
    %451 = vmatprep.subr.mxu0 0.0
    %452 = vmatpush1.msra.mxu0 %v424
    %453 = vmatprep.subr.mxu0 0.0
    %454 = vmatpush1.msra.mxu0 %v425
    %455 = vmatprep.subr.mxu0 0.0
    %456 = vmatpush1.msra.mxu0 %v426
    %457 = vmatprep.subr.mxu0 0.0
    %458 = vmatpush1.msra.mxu0 %v427
    %459 = vmatprep.subr.mxu0 0.0
    %460 = vmatpush1.msra.mxu0 %v428
    %461 = vmatprep.subr.mxu0 0.0
    %462 = vmatpush1.msra.mxu0 0.0
    %463 = vmatprep.subr.mxu0 0.0
    %464 = vmatpush1.msra.mxu0 0.0
    %465 = vmatprep.subr.mxu0 0.0
    %466 = vmatpush1.msra.mxu0 0.0
    %467 = vmatprep.subr.mxu0 0.0
    %468 = vmatpush1.msra.mxu0 0.0
    %469 = vmatprep.subr.mxu0 0.0
    %470 = vmatpush1.msra.mxu0 0.0
    %471 = vmatprep.subr.mxu0 0.0
    %472 = vmatpush1.msra.mxu0 0.0
    %473 = vmatprep.subr.mxu0 0.0
    %474 = vmatpush1.msra.mxu0 0.0
    %475 = vmatprep.subr.mxu0 0.0
    %476 = vmatpush1.msra.mxu0 0.0
    %477 = vmatprep.subr.mxu0 0.0
    %478 = vmatpush1.msra.mxu0 0.0
    %479 = vmatprep.subr.mxu0 0.0
    %480 = vmatpush1.msra.mxu0 0.0
    %481 = vmatprep.subr.mxu0 0.0
    %482 = vmatpush1.msra.mxu0 0.0
    %483 = vmatprep.subr.mxu0 0.0
    %484 = vmatpush1.msra.mxu0 0.0
    %485 = vmatprep.subr.mxu0 0.0
    %486 = vmatpush1.msra.mxu0 0.0
    %487 = vmatprep.subr.mxu0 0.0
    %488 = vmatpush1.msra.mxu0 0.0
    %489 = vmatprep.subr.mxu0 0.0
    %490 = vmatpush1.msra.mxu0 0.0
    %491 = vmatprep.subr.mxu0 0.0
    %492 = vmatpush1.msra.mxu0 0.0
    %493 = vmatprep.mubr.f32.mxu0 0.0
    %494 = vmatmul.mubr.f32.gmra.mrb[0].mxu0 %v60
    %v495 = vpop.f32.mrb[0].mxu0
    %v496 = vadd.f32 0.0, %v495
    %v497 = vpop.f32.mrb[0].mxu0
    %498 = vmatprep.mubr.f32.mxu0 0.0
    %499 = vmatmul.mubr.f32.gmra.mrb[0].mxu0 %v61
    %v500 = vpop.f32.mrb[0].mxu0
    %v501 = vadd.f32 0.0, %v500
    %v502 = vpop.f32.mrb[0].mxu0
    %503 = vmatprep.mubr.f32.mxu0 0.0
    %504 = vmatmul.mubr.f32.gmra.mrb[0].mxu0 %v62
    %v505 = vpop.f32.mrb[0].mxu0
    %v506 = vadd.f32 0.0, %v505
    %v507 = vpop.f32.mrb[0].mxu0
    %508 = vmatprep.mubr.f32.mxu0 0.0
    %509 = vmatmul.mubr.f32.gmra.mrb[0].mxu0 %v63
    %v510 = vpop.f32.mrb[0].mxu0
    %v511 = vadd.f32 0.0, %v510
    %v512 = vpop.f32.mrb[0].mxu0
    %513 = vmatprep.mubr.f32.mxu0 0.0
    %514 = vmatmul.mubr.f32.gmra.mrb[0].mxu0 %v64
    %v515 = vpop.f32.mrb[0].mxu0
    %v516 = vadd.f32 0.0, %v515
    %v517 = vpop.f32.mrb[0].mxu0
    %518 = vmatprep.mubr.f32.mxu0 0.0
    %519 = vmatmul.mubr.f32.gmra.mrb[0].mxu0 %v65
    %v520 = vpop.f32.mrb[0].mxu0
    %v521 = vadd.f32 0.0, %v520
    %v522 = vpop.f32.mrb[0].mxu0
    %523 = vmatprep.mubr.f32.mxu0 0.0
    %524 = vmatmul.mubr.f32.gmra.mrb[0].mxu0 %v66
    %v525 = vpop.f32.mrb[0].mxu0
    %v526 = vadd.f32 0.0, %v525
    %v527 = vpop.f32.mrb[0].mxu0
    %528 = vmatprep.mubr.f32.mxu0 0.0
    %529 = vmatmul.mubr.f32.gmra.mrb[0].mxu0 %v67
    %v530 = vpop.f32.mrb[0].mxu0
    %v531 = vadd.f32 0.0, %v530
    %v532 = vpop.f32.mrb[0].mxu0
    %533 = vmatprep.mubr.f32.mxu0 0.0
    %534 = vmatmul.mubr.f32.gmra.mrb[0].mxu0 %v68
    %v535 = vpop.f32.mrb[0].mxu0
    %v536 = vadd.f32 0.0, %v535
    %v537 = vpop.f32.mrb[0].mxu0
    %538 = vmatprep.mubr.f32.mxu0 0.0
    %539 = vmatmul.mubr.f32.gmra.mrb[0].mxu0 %v69
    %v540 = vpop.f32.mrb[0].mxu0
    %v541 = vadd.f32 0.0, %v540
    %v542 = vpop.f32.mrb[0].mxu0
    %543 = vmatprep.mubr.f32.mxu0 0.0
    %544 = vmatmul.mubr.f32.gmra.mrb[0].mxu0 %v70
    %v545 = vpop.f32.mrb[0].mxu0
    %v546 = vadd.f32 0.0, %v545
    %v547 = vpop.f32.mrb[0].mxu0
    %548 = vmatprep.mubr.f32.mxu0 0.0
    %549 = vmatmul.mubr.f32.gmra.mrb[0].mxu0 %v71
    %v550 = vpop.f32.mrb[0].mxu0
    %v551 = vadd.f32 0.0, %v550
    %v552 = vpop.f32.mrb[0].mxu0
    %553 = vmatprep.mubr.f32.mxu0 0.0
    %554 = vmatmul.mubr.f32.gmra.mrb[0].mxu0 %v72
    %v555 = vpop.f32.mrb[0].mxu0
    %v556 = vadd.f32 0.0, %v555
    %v557 = vpop.f32.mrb[0].mxu0
    %558 = vmatprep.mubr.f32.mxu0 0.0
    %559 = vmatmul.mubr.f32.gmra.mrb[0].mxu0 %v73
    %v560 = vpop.f32.mrb[0].mxu0
    %v561 = vadd.f32 0.0, %v560
    %v562 = vpop.f32.mrb[0].mxu0
    %563 = vmatprep.mubr.f32.mxu0 0.0
    %564 = vmatmul.mubr.f32.gmra.mrb[0].mxu0 %v74
    %v565 = vpop.f32.mrb[0].mxu0
    %v566 = vadd.f32 0.0, %v565
    %v567 = vpop.f32.mrb[0].mxu0
    %568 = vmatprep.mubr.f32.mxu0 0.0
    %569 = vmatmul.mubr.f32.gmra.mrb[0].mxu0 %v75
    %v570 = vpop.f32.mrb[0].mxu0
    %v571 = vadd.f32 0.0, %v570
    %v572 = vpop.f32.mrb[0].mxu0
    %573 = vdwg.mxu0
    %v574 = vpack.c.bf16 %v501, %v496
    %v575 = vpack.c.bf16 %v511, %v506
    %v576 = vpack.c.bf16 %v521, %v516
    %v577 = vpack.c.bf16 %v531, %v526
    %v578 = vpack.c.bf16 %v541, %v536
    %v579 = vpack.c.bf16 %v551, %v546
    %v580 = vpack.c.bf16 %v561, %v556
    %v581 = vpack.c.bf16 %v571, %v566
    %s582 = scalar_lea.vmem [#allocation7], 64
    %v583 = vld [vmem:[%s582] sm:$0xf]
    %v584 = vld [vmem:[%s582 + $0x4] sm:$0xf]
    %v585 = vld [vmem:[%s582 + $0x8] sm:$0xf]
    %v586 = vld [vmem:[%s582 + $0xc] sm:$0xf]
    %v587 = vld [vmem:[%s582 + $0x10] sm:$0xf]
    %v588 = vld [vmem:[%s582 + $0x14] sm:$0xf]
    %v589 = vld [vmem:[%s582 + $0x18] sm:$0xf]
    %v590 = vld [vmem:[%s582 + $0x1c] sm:$0xf]
    %v591 = vld [vmem:[%s582 + $0x20] sm:$0xf]
    %v592 = vld [vmem:[%s582 + $0x24] sm:$0xf]
    %v593 = vld [vmem:[%s582 + $0x28] sm:$0xf]
    %v594 = vld [vmem:[%s582 + $0x2c] sm:$0xf]
    %v595 = vld [vmem:[%s582 + $0x30] sm:$0xf]
    %v596 = vld [vmem:[%s582 + $0x34] sm:$0xf]
    %v597 = vld [vmem:[%s582 + $0x38] sm:$0xf]
    %v598 = vld [vmem:[%s582 + $0x3c] sm:$0xf]
    %s599 = scalar_lea.vmem %s3, 1
    %v600 = vld [vmem:[%s599] sm:$0x1]
    %v602 = vlaneseq
    %v603 = vshrl.u32 %v602, 7
    %v604 = vsub.s32 0, %v603
    %v605 = vrot.slane %v600, %v604
    %v623 = vunpack.c.l.b16 %v583
    %v624 = vunpack.c.l.b16 %v584
    %v625 = vunpack.c.l.b16 %v585
    %v626 = vunpack.c.l.b16 %v586
    %v627 = vunpack.c.l.b16 %v587
    %v628 = vunpack.c.l.b16 %v588
    %v629 = vunpack.c.l.b16 %v589
    %v630 = vunpack.c.l.b16 %v590
    %v631 = vunpack.c.l.b16 %v591
    %v632 = vunpack.c.l.b16 %v592
    %v633 = vunpack.c.l.b16 %v593
    %v634 = vunpack.c.l.b16 %v594
    %v635 = vunpack.c.l.b16 %v595
    %v636 = vunpack.c.l.b16 %v596
    %v637 = vunpack.c.l.b16 %v597
    %v638 = vunpack.c.l.b16 %v598
    %v639 = vpack.c.b16 %v624, %v623
    %v640 = vpack.c.b16 %v626, %v625
    %v641 = vpack.c.b16 %v628, %v627
    %v642 = vpack.c.b16 %v630, %v629
    %v643 = vpack.c.b16 %v632, %v631
    %v644 = vpack.c.b16 %v634, %v633
    %v645 = vpack.c.b16 %v636, %v635
    %v646 = vpack.c.b16 %v638, %v637
    %655 = vmatprep.subr.bf16.mxu0 0
    %656 = vmatpush1.bf16.msra.mxu0 %v639
    %657 = vmatprep.subr.bf16.mxu0 0
    %658 = vmatpush1.bf16.msra.mxu0 %v640
    %659 = vmatprep.subr.bf16.mxu0 0
    %660 = vmatpush1.bf16.msra.mxu0 %v641
    %661 = vmatprep.subr.bf16.mxu0 0
    %662 = vmatpush1.bf16.msra.mxu0 %v642
    %663 = vmatprep.subr.bf16.mxu0 0
    %664 = vmatpush1.bf16.msra.mxu0 %v643
    %665 = vmatprep.subr.bf16.mxu0 0
    %666 = vmatpush1.bf16.msra.mxu0 %v644
    %667 = vmatprep.subr.bf16.mxu0 0
    %668 = vmatpush1.bf16.msra.mxu0 %v645
    %669 = vmatprep.subr.bf16.mxu0 0
    %670 = vmatpush1.bf16.msra.mxu0 %v646
    %671 = vmatprep.subr.bf16.mxu0 0
    %672 = vmatpush1.bf16.msra.mxu0 0
    %673 = vmatprep.subr.bf16.mxu0 0
    %674 = vmatpush1.bf16.msra.mxu0 0
    %675 = vmatprep.subr.bf16.mxu0 0
    %676 = vmatpush1.bf16.msra.mxu0 0
    %677 = vmatprep.subr.bf16.mxu0 0
    %678 = vmatpush1.bf16.msra.mxu0 0
    %679 = vmatprep.subr.bf16.mxu0 0
    %680 = vmatpush1.bf16.msra.mxu0 0
    %681 = vmatprep.subr.bf16.mxu0 0
    %682 = vmatpush1.bf16.msra.mxu0 0
    %683 = vmatprep.subr.bf16.mxu0 0
    %684 = vmatpush1.bf16.msra.mxu0 0
    %685 = vmatprep.subr.bf16.mxu0 0
    %686 = vmatpush1.bf16.msra.mxu0 0
    %687 = vmatprep.mubr.bf16.mxu0 0
    %688 = vmatmul.mubr.bf16.gmra.mrb[0].mxu0 %v574
    %v689 = vpop.f32.mrb[0].mxu0
    %v690 = vadd.f32 %v605, %v689
    %v691 = vpop.f32.mrb[0].mxu0
    %v692 = vpop.f32.mrb[0].mxu0
    %v693 = vadd.f32 %v605, %v692
    %v694 = vpop.f32.mrb[0].mxu0
    %695 = vmatprep.mubr.bf16.mxu0 0
    %696 = vmatmul.mubr.bf16.gmra.mrb[0].mxu0 %v575
    %v697 = vpop.f32.mrb[0].mxu0
    %v698 = vadd.f32 %v605, %v697
    %v699 = vpop.f32.mrb[0].mxu0
    %v700 = vpop.f32.mrb[0].mxu0
    %v701 = vadd.f32 %v605, %v700
    %v702 = vpop.f32.mrb[0].mxu0
    %703 = vmatprep.mubr.bf16.mxu0 0
    %704 = vmatmul.mubr.bf16.gmra.mrb[0].mxu0 %v576
    %v705 = vpop.f32.mrb[0].mxu0
    %v706 = vadd.f32 %v605, %v705
    %v707 = vpop.f32.mrb[0].mxu0
    %v708 = vpop.f32.mrb[0].mxu0
    %v709 = vadd.f32 %v605, %v708
    %v710 = vpop.f32.mrb[0].mxu0
    %711 = vmatprep.mubr.bf16.mxu0 0
    %712 = vmatmul.mubr.bf16.gmra.mrb[0].mxu0 %v577
    %v713 = vpop.f32.mrb[0].mxu0
    %v714 = vadd.f32 %v605, %v713
    %v715 = vpop.f32.mrb[0].mxu0
    %v716 = vpop.f32.mrb[0].mxu0
    %v717 = vadd.f32 %v605, %v716
    %v718 = vpop.f32.mrb[0].mxu0
    %719 = vmatprep.mubr.bf16.mxu0 0
    %720 = vmatmul.mubr.bf16.gmra.mrb[0].mxu0 %v578
    %v721 = vpop.f32.mrb[0].mxu0
    %v722 = vadd.f32 %v605, %v721
    %v723 = vpop.f32.mrb[0].mxu0
    %v724 = vpop.f32.mrb[0].mxu0
    %v725 = vadd.f32 %v605, %v724
    %v726 = vpop.f32.mrb[0].mxu0
    %727 = vmatprep.mubr.bf16.mxu0 0
    %728 = vmatmul.mubr.bf16.gmra.mrb[0].mxu0 %v579
    %v729 = vpop.f32.mrb[0].mxu0
    %v730 = vadd.f32 %v605, %v729
    %v731 = vpop.f32.mrb[0].mxu0
    %v732 = vpop.f32.mrb[0].mxu0
    %v733 = vadd.f32 %v605, %v732
    %v734 = vpop.f32.mrb[0].mxu0
    %735 = vmatprep.mubr.bf16.mxu0 0
    %736 = vmatmul.mubr.bf16.gmra.mrb[0].mxu0 %v580
    %v737 = vpop.f32.mrb[0].mxu0
    %v738 = vadd.f32 %v605, %v737
    %v739 = vpop.f32.mrb[0].mxu0
    %v740 = vpop.f32.mrb[0].mxu0
    %v741 = vadd.f32 %v605, %v740
    %v742 = vpop.f32.mrb[0].mxu0
    %743 = vmatprep.mubr.bf16.mxu0 0
    %744 = vmatmul.mubr.bf16.gmra.mrb[0].mxu0 %v581
    %v745 = vpop.f32.mrb[0].mxu0
    %v746 = vadd.f32 %v605, %v745
    %v747 = vpop.f32.mrb[0].mxu0
    %v748 = vpop.f32.mrb[0].mxu0
    %v749 = vadd.f32 %v605, %v748
    %v750 = vpop.f32.mrb[0].mxu0
    %751 = vdwg.mxu0
    %v752 = vmax.f32 %v690, 0.0
    %v753 = vmax.f32 %v693, 0.0
    %v754 = vmax.f32 %v698, 0.0
    %v755 = vmax.f32 %v701, 0.0
    %v756 = vmax.f32 %v706, 0.0
    %v757 = vmax.f32 %v709, 0.0
    %v758 = vmax.f32 %v714, 0.0
    %v759 = vmax.f32 %v717, 0.0
    %v760 = vmax.f32 %v722, 0.0
    %v761 = vmax.f32 %v725, 0.0
    %v762 = vmax.f32 %v730, 0.0
    %v763 = vmax.f32 %v733, 0.0
    %v764 = vmax.f32 %v738, 0.0
    %v765 = vmax.f32 %v741, 0.0
    %v766 = vmax.f32 %v746, 0.0
    %v767 = vmax.f32 %v749, 0.0
    %768 = vmatprep.subr.mxu0 0.0
    %769 = vmatpush1.msra.mxu0 %v752
    %770 = vmatprep.subr.mxu0 0.0
    %771 = vmatpush1.msra.mxu0 %v753
    %772 = vmatprep.subr.mxu0 0.0
    %773 = vmatpush1.msra.mxu0 %v754
    %774 = vmatprep.subr.mxu0 0.0
    %775 = vmatpush1.msra.mxu0 %v755
    %776 = vmatprep.subr.mxu0 0.0
    %777 = vmatpush1.msra.mxu0 %v756
    %778 = vmatprep.subr.mxu0 0.0
    %779 = vmatpush1.msra.mxu0 %v757
    %780 = vmatprep.subr.mxu0 0.0
    %781 = vmatpush1.msra.mxu0 %v758
    %782 = vmatprep.subr.mxu0 0.0
    %783 = vmatpush1.msra.mxu0 %v759
    %784 = vmatprep.subr.mxu0 0.0
    %785 = vmatpush1.msra.mxu0 %v760
    %786 = vmatprep.subr.mxu0 0.0
    %787 = vmatpush1.msra.mxu0 %v761
    %788 = vmatprep.subr.mxu0 0.0
    %789 = vmatpush1.msra.mxu0 %v762
    %790 = vmatprep.subr.mxu0 0.0
    %791 = vmatpush1.msra.mxu0 %v763
    %792 = vmatprep.subr.mxu0 0.0
    %793 = vmatpush1.msra.mxu0 %v764
    %794 = vmatprep.subr.mxu0 0.0
    %795 = vmatpush1.msra.mxu0 %v765
    %796 = vmatprep.subr.mxu0 0.0
    %797 = vmatpush1.msra.mxu0 %v766
    %798 = vmatprep.subr.mxu0 0.0
    %799 = vmatpush1.msra.mxu0 %v767
    %800 = vmatprep.subr.mxu0 0.0
    %801 = vmatpush1.msra.mxu0 0.0
    %802 = vmatprep.subr.mxu0 0.0
    %803 = vmatpush1.msra.mxu0 0.0
    %804 = vmatprep.subr.mxu0 0.0
    %805 = vmatpush1.msra.mxu0 0.0
    %806 = vmatprep.subr.mxu0 0.0
    %807 = vmatpush1.msra.mxu0 0.0
    %808 = vmatprep.subr.mxu0 0.0
    %809 = vmatpush1.msra.mxu0 0.0
    %810 = vmatprep.subr.mxu0 0.0
    %811 = vmatpush1.msra.mxu0 0.0
    %812 = vmatprep.subr.mxu0 0.0
    %813 = vmatpush1.msra.mxu0 0.0
    %814 = vmatprep.subr.mxu0 0.0
    %815 = vmatpush1.msra.mxu0 0.0
    %816 = vmatprep.subr.mxu0 0.0
    %817 = vmatpush1.msra.mxu0 0.0
    %818 = vmatprep.subr.mxu0 0.0
    %819 = vmatpush1.msra.mxu0 0.0
    %820 = vmatprep.subr.mxu0 0.0
    %821 = vmatpush1.msra.mxu0 0.0
    %822 = vmatprep.subr.mxu0 0.0
    %823 = vmatpush1.msra.mxu0 0.0
    %824 = vmatprep.subr.mxu0 0.0
    %825 = vmatpush1.msra.mxu0 0.0
    %826 = vmatprep.subr.mxu0 0.0
    %827 = vmatpush1.msra.mxu0 0.0
    %828 = vmatprep.subr.mxu0 0.0
    %829 = vmatpush1.msra.mxu0 0.0
    %830 = vmatprep.subr.mxu0 0.0
    %831 = vmatpush1.msra.mxu0 0.0
    %832 = vmatprep.mubr.f32.mxu0 0.0
    %833 = vmatmul.mubr.f32.gmra.mrb[0].mxu0 %v60
    %v834 = vpop.f32.mrb[0].mxu0
    %v835 = vadd.f32 0.0, %v834
    %v836 = vpop.f32.mrb[0].mxu0
    %837 = vmatprep.mubr.f32.mxu0 0.0
    %838 = vmatmul.mubr.f32.gmra.mrb[0].mxu0 %v61
    %v839 = vpop.f32.mrb[0].mxu0
    %v840 = vadd.f32 0.0, %v839
    %v841 = vpop.f32.mrb[0].mxu0
    %842 = vmatprep.mubr.f32.mxu0 0.0
    %843 = vmatmul.mubr.f32.gmra.mrb[0].mxu0 %v62
    %v844 = vpop.f32.mrb[0].mxu0
    %v845 = vadd.f32 0.0, %v844
    %v846 = vpop.f32.mrb[0].mxu0
    %847 = vmatprep.mubr.f32.mxu0 0.0
    %848 = vmatmul.mubr.f32.gmra.mrb[0].mxu0 %v63
    %v849 = vpop.f32.mrb[0].mxu0
    %v850 = vadd.f32 0.0, %v849
    %v851 = vpop.f32.mrb[0].mxu0
    %852 = vmatprep.mubr.f32.mxu0 0.0
    %853 = vmatmul.mubr.f32.gmra.mrb[0].mxu0 %v64
    %v854 = vpop.f32.mrb[0].mxu0
    %v855 = vadd.f32 0.0, %v854
    %v856 = vpop.f32.mrb[0].mxu0
    %857 = vmatprep.mubr.f32.mxu0 0.0
    %858 = vmatmul.mubr.f32.gmra.mrb[0].mxu0 %v65
    %v859 = vpop.f32.mrb[0].mxu0
    %v860 = vadd.f32 0.0, %v859
    %v861 = vpop.f32.mrb[0].mxu0
    %862 = vmatprep.mubr.f32.mxu0 0.0
    %863 = vmatmul.mubr.f32.gmra.mrb[0].mxu0 %v66
    %v864 = vpop.f32.mrb[0].mxu0
    %v865 = vadd.f32 0.0, %v864
    %v866 = vpop.f32.mrb[0].mxu0
    %867 = vmatprep.mubr.f32.mxu0 0.0
    %868 = vmatmul.mubr.f32.gmra.mrb[0].mxu0 %v67
    %v869 = vpop.f32.mrb[0].mxu0
    %v870 = vadd.f32 0.0, %v869
    %v871 = vpop.f32.mrb[0].mxu0
    %872 = vmatprep.mubr.f32.mxu0 0.0
    %873 = vmatmul.mubr.f32.gmra.mrb[0].mxu0 %v68
    %v874 = vpop.f32.mrb[0].mxu0
    %v875 = vadd.f32 0.0, %v874
    %v876 = vpop.f32.mrb[0].mxu0
    %877 = vmatprep.mubr.f32.mxu0 0.0
    %878 = vmatmul.mubr.f32.gmra.mrb[0].mxu0 %v69
    %v879 = vpop.f32.mrb[0].mxu0
    %v880 = vadd.f32 0.0, %v879
    %v881 = vpop.f32.mrb[0].mxu0
    %882 = vmatprep.mubr.f32.mxu0 0.0
    %883 = vmatmul.mubr.f32.gmra.mrb[0].mxu0 %v70
    %v884 = vpop.f32.mrb[0].mxu0
    %v885 = vadd.f32 0.0, %v884
    %v886 = vpop.f32.mrb[0].mxu0
    %887 = vmatprep.mubr.f32.mxu0 0.0
    %888 = vmatmul.mubr.f32.gmra.mrb[0].mxu0 %v71
    %v889 = vpop.f32.mrb[0].mxu0
    %v890 = vadd.f32 0.0, %v889
    %v891 = vpop.f32.mrb[0].mxu0
    %892 = vmatprep.mubr.f32.mxu0 0.0
    %893 = vmatmul.mubr.f32.gmra.mrb[0].mxu0 %v72
    %v894 = vpop.f32.mrb[0].mxu0
    %v895 = vadd.f32 0.0, %v894
    %v896 = vpop.f32.mrb[0].mxu0
    %897 = vmatprep.mubr.f32.mxu0 0.0
    %898 = vmatmul.mubr.f32.gmra.mrb[0].mxu0 %v73
    %v899 = vpop.f32.mrb[0].mxu0
    %v900 = vadd.f32 0.0, %v899
    %v901 = vpop.f32.mrb[0].mxu0
    %902 = vmatprep.mubr.f32.mxu0 0.0
    %903 = vmatmul.mubr.f32.gmra.mrb[0].mxu0 %v74
    %v904 = vpop.f32.mrb[0].mxu0
    %v905 = vadd.f32 0.0, %v904
    %v906 = vpop.f32.mrb[0].mxu0
    %907 = vmatprep.mubr.f32.mxu0 0.0
    %908 = vmatmul.mubr.f32.gmra.mrb[0].mxu0 %v75
    %v909 = vpop.f32.mrb[0].mxu0
    %v910 = vadd.f32 0.0, %v909
    %v911 = vpop.f32.mrb[0].mxu0
    %912 = vdwg.mxu0
    %v913 = vpack.c.bf16 %v840, %v835
    %v914 = vpack.c.bf16 %v850, %v845
    %v915 = vpack.c.bf16 %v860, %v855
    %v916 = vpack.c.bf16 %v870, %v865
    %v917 = vpack.c.bf16 %v880, %v875
    %v918 = vpack.c.bf16 %v890, %v885
    %v919 = vpack.c.bf16 %v900, %v895
    %v920 = vpack.c.bf16 %v910, %v905
    %s921 = scalar_lea.vmem [#allocation7], 128
    %v922 = vld [vmem:[%s921] sm:$0xf]
    %v923 = vld [vmem:[%s921 + $0x4] sm:$0xf]
    %v924 = vld [vmem:[%s921 + $0x8] sm:$0xf]
    %v925 = vld [vmem:[%s921 + $0xc] sm:$0xf]
    %v926 = vld [vmem:[%s921 + $0x10] sm:$0xf]
    %v927 = vld [vmem:[%s921 + $0x14] sm:$0xf]
    %v928 = vld [vmem:[%s921 + $0x18] sm:$0xf]
    %v929 = vld [vmem:[%s921 + $0x1c] sm:$0xf]
    %v930 = vld [vmem:[%s921 + $0x20] sm:$0xf]
    %v931 = vld [vmem:[%s921 + $0x24] sm:$0xf]
    %v932 = vld [vmem:[%s921 + $0x28] sm:$0xf]
    %v933 = vld [vmem:[%s921 + $0x2c] sm:$0xf]
    %v934 = vld [vmem:[%s921 + $0x30] sm:$0xf]
    %v935 = vld [vmem:[%s921 + $0x34] sm:$0xf]
    %v936 = vld [vmem:[%s921 + $0x38] sm:$0xf]
    %v937 = vld [vmem:[%s921 + $0x3c] sm:$0xf]
    %s938 = scalar_lea.vmem %s3, 2
    %v939 = vld [vmem:[%s938] sm:$0x1]
    %v941 = vlaneseq
    %v942 = vshrl.u32 %v941, 7
    %v943 = vsub.s32 0, %v942
    %v944 = vrot.slane %v939, %v943
    %v962 = vunpack.c.l.b16 %v922
    %v963 = vunpack.c.l.b16 %v923
    %v964 = vunpack.c.l.b16 %v924
    %v965 = vunpack.c.l.b16 %v925
    %v966 = vunpack.c.l.b16 %v926
    %v967 = vunpack.c.l.b16 %v927
    %v968 = vunpack.c.l.b16 %v928
    %v969 = vunpack.c.l.b16 %v929
    %v970 = vunpack.c.l.b16 %v930
    %v971 = vunpack.c.l.b16 %v931
    %v972 = vunpack.c.l.b16 %v932
    %v973 = vunpack.c.l.b16 %v933
    %v974 = vunpack.c.l.b16 %v934
    %v975 = vunpack.c.l.b16 %v935
    %v976 = vunpack.c.l.b16 %v936
    %v977 = vunpack.c.l.b16 %v937
    %v978 = vpack.c.b16 %v963, %v962
    %v979 = vpack.c.b16 %v965, %v964
    %v980 = vpack.c.b16 %v967, %v966
    %v981 = vpack.c.b16 %v969, %v968
    %v982 = vpack.c.b16 %v971, %v970
    %v983 = vpack.c.b16 %v973, %v972
    %v984 = vpack.c.b16 %v975, %v974
    %v985 = vpack.c.b16 %v977, %v976
    %994 = vmatprep.subr.bf16.mxu0 0
    %995 = vmatpush1.bf16.msra.mxu0 %v978
    %996 = vmatprep.subr.bf16.mxu0 0
    %997 = vmatpush1.bf16.msra.mxu0 %v979
    %998 = vmatprep.subr.bf16.mxu0 0
    %999 = vmatpush1.bf16.msra.mxu0 %v980
    %1000 = vmatprep.subr.bf16.mxu0 0
    %1001 = vmatpush1.bf16.msra.mxu0 %v981
    %1002 = vmatprep.subr.bf16.mxu0 0
    %1003 = vmatpush1.bf16.msra.mxu0 %v982
    %1004 = vmatprep.subr.bf16.mxu0 0
    %1005 = vmatpush1.bf16.msra.mxu0 %v983
    %1006 = vmatprep.subr.bf16.mxu0 0
    %1007 = vmatpush1.bf16.msra.mxu0 %v984
    %1008 = vmatprep.subr.bf16.mxu0 0
    %1009 = vmatpush1.bf16.msra.mxu0 %v985
    %1010 = vmatprep.subr.bf16.mxu0 0
    %1011 = vmatpush1.bf16.msra.mxu0 0
    %1012 = vmatprep.subr.bf16.mxu0 0
    %1013 = vmatpush1.bf16.msra.mxu0 0
    %1014 = vmatprep.subr.bf16.mxu0 0
    %1015 = vmatpush1.bf16.msra.mxu0 0
    %1016 = vmatprep.subr.bf16.mxu0 0
    %1017 = vmatpush1.bf16.msra.mxu0 0
    %1018 = vmatprep.subr.bf16.mxu0 0
    %1019 = vmatpush1.bf16.msra.mxu0 0
    %1020 = vmatprep.subr.bf16.mxu0 0
    %1021 = vmatpush1.bf16.msra.mxu0 0
    %1022 = vmatprep.subr.bf16.mxu0 0
    %1023 = vmatpush1.bf16.msra.mxu0 0
    %1024 = vmatprep.subr.bf16.mxu0 0
    %1025 = vmatpush1.bf16.msra.mxu0 0
    %1026 = vmatprep.mubr.bf16.mxu0 0
    %1027 = vmatmul.mubr.bf16.gmra.mrb[0].mxu0 %v913
    %v1028 = vpop.f32.mrb[0].mxu0
    %v1029 = vadd.f32 %v944, %v1028
    %v1030 = vpop.f32.mrb[0].mxu0
    %v1031 = vpop.f32.mrb[0].mxu0
    %v1032 = vadd.f32 %v944, %v1031
    %v1033 = vpop.f32.mrb[0].mxu0
    %1034 = vmatprep.mubr.bf16.mxu0 0
    %1035 = vmatmul.mubr.bf16.gmra.mrb[0].mxu0 %v914
    %v1036 = vpop.f32.mrb[0].mxu0
    %v1037 = vadd.f32 %v944, %v1036
    %v1038 = vpop.f32.mrb[0].mxu0
    %v1039 = vpop.f32.mrb[0].mxu0
    %v1040 = vadd.f32 %v944, %v1039
    %v1041 = vpop.f32.mrb[0].mxu0
    %1042 = vmatprep.mubr.bf16.mxu0 0
    %1043 = vmatmul.mubr.bf16.gmra.mrb[0].mxu0 %v915
    %v1044 = vpop.f32.mrb[0].mxu0
    %v1045 = vadd.f32 %v944, %v1044
    %v1046 = vpop.f32.mrb[0].mxu0
    %v1047 = vpop.f32.mrb[0].mxu0
    %v1048 = vadd.f32 %v944, %v1047
    %v1049 = vpop.f32.mrb[0].mxu0
    %1050 = vmatprep.mubr.bf16.mxu0 0
    %1051 = vmatmul.mubr.bf16.gmra.mrb[0].mxu0 %v916
    %v1052 = vpop.f32.mrb[0].mxu0
    %v1053 = vadd.f32 %v944, %v1052
    %v1054 = vpop.f32.mrb[0].mxu0
    %v1055 = vpop.f32.mrb[0].mxu0
    %v1056 = vadd.f32 %v944, %v1055
    %v1057 = vpop.f32.mrb[0].mxu0
    %1058 = vmatprep.mubr.bf16.mxu0 0
    %1059 = vmatmul.mubr.bf16.gmra.mrb[0].mxu0 %v917
    %v1060 = vpop.f32.mrb[0].mxu0
    %v1061 = vadd.f32 %v944, %v1060
    %v1062 = vpop.f32.mrb[0].mxu0
    %v1063 = vpop.f32.mrb[0].mxu0
    %v1064 = vadd.f32 %v944, %v1063
    %v1065 = vpop.f32.mrb[0].mxu0
    %1066 = vmatprep.mubr.bf16.mxu0 0
    %1067 = vmatmul.mubr.bf16.gmra.mrb[0].mxu0 %v918
    %v1068 = vpop.f32.mrb[0].mxu0
    %v1069 = vadd.f32 %v944, %v1068
    %v1070 = vpop.f32.mrb[0].mxu0
    %v1071 = vpop.f32.mrb[0].mxu0
    %v1072 = vadd.f32 %v944, %v1071
    %v1073 = vpop.f32.mrb[0].mxu0
    %1074 = vmatprep.mubr.bf16.mxu0 0
    %1075 = vmatmul.mubr.bf16.gmra.mrb[0].mxu0 %v919
    %v1076 = vpop.f32.mrb[0].mxu0
    %v1077 = vadd.f32 %v944, %v1076
    %v1078 = vpop.f32.mrb[0].mxu0
    %v1079 = vpop.f32.mrb[0].mxu0
    %v1080 = vadd.f32 %v944, %v1079
    %v1081 = vpop.f32.mrb[0].mxu0
    %1082 = vmatprep.mubr.bf16.mxu0 0
    %1083 = vmatmul.mubr.bf16.gmra.mrb[0].mxu0 %v920
    %v1084 = vpop.f32.mrb[0].mxu0
    %v1085 = vadd.f32 %v944, %v1084
    %v1086 = vpop.f32.mrb[0].mxu0
    %v1087 = vpop.f32.mrb[0].mxu0
    %v1088 = vadd.f32 %v944, %v1087
    %v1089 = vpop.f32.mrb[0].mxu0
    %1090 = vdwg.mxu0
    %1091 = vst [vmem:[#allocation8] sm:$0xff] %v1029
    %1092 = vst [vmem:[#allocation8 + $0x8] sm:$0xff] %v1032
    %1093 = vst [vmem:[#allocation8 + $0x10] sm:$0xff] %v1037
    %1094 = vst [vmem:[#allocation8 + $0x18] sm:$0xff] %v1040
    %1095 = vst [vmem:[#allocation8 + $0x20] sm:$0xff] %v1045
    %1096 = vst [vmem:[#allocation8 + $0x28] sm:$0xff] %v1048
    %1097 = vst [vmem:[#allocation8 + $0x30] sm:$0xff] %v1053
    %1098 = vst [vmem:[#allocation8 + $0x38] sm:$0xff] %v1056
    %1099 = vst [vmem:[#allocation8 + $0x40] sm:$0xff] %v1061
    %1100 = vst [vmem:[#allocation8 + $0x48] sm:$0xff] %v1064
    %1101 = vst [vmem:[#allocation8 + $0x50] sm:$0xff] %v1069
    %1102 = vst [vmem:[#allocation8 + $0x58] sm:$0xff] %v1072
    %1103 = vst [vmem:[#allocation8 + $0x60] sm:$0xff] %v1077
    %1104 = vst [vmem:[#allocation8 + $0x68] sm:$0xff] %v1080
    %1105 = vst [vmem:[#allocation8 + $0x70] sm:$0xff] %v1085
    %1106 = vst [vmem:[#allocation8 + $0x78] sm:$0xff] %v1088
    // Predicated region
    $region30: #{tpu_custom_call.1} parent=1 // pred_check
      _
    $region31: #{tpu_custom_call.1} parent=1 // pred_check_branch
      %1108 = sbr.rel (0) target = $region33
    $region32: #{tpu_custom_call.1} parent=1 // pred_region
      %s1110 = ssub.s32 2048, 2048
      %1111 = vsyncadd [#allocation4], %s1110
      %s1112 = sshll.u32 [#allocation8], 4
      %s1113 = int_to_ptr.vmem [resolvable:$true] %s1112
      %1118 = dma.vmem_to_hbm [thread:$0]  %s1113, 2048, %s4, [#allocation4], 128, 128, 8
    $region33: #{tpu_custom_call.1} parent=1 // pred_fallthru
      _
    // Predicated region
    $region34: #{tpu_custom_call.1} parent=1 // pred_check
      _
    $region35: #{tpu_custom_call.1} parent=1 // pred_check_branch
      %1120 = sbr.rel (0) target = $region37
    $region36: #{tpu_custom_call.1} parent=1 // pred_region
      %1121 = dma.done [#allocation4], 2048
    $region37: #{tpu_custom_call.1} parent=1 // pred_fallthru
      _
    %1122 = vsyncpa [#allocation3], 1
    %1123 = vsyncpa [#allocation6], 1
    %1124 = vsyncpa [#allocation4], 1

</llo_original>
